<compile_context>
chip_gen: v7x
topology: tpu7x:2x2x1
jax: 0.10.0
libtpu: 0.0.40
codegen_flags: <defaults>
</compile_context>

<pallas_src>
import functools
import math

import numpy as np
import jax
import jax.numpy as jnp
from jax import lax
from jax.experimental import pallas as pl
from jax.experimental.pallas import tpu as pltpu


def _round_up(x, m):
    return ((x + m - 1) // m) * m


def _nearest_indices(out_size, in_size):
    # PyTorch F.interpolate(mode='nearest', size=out): src = floor(dst * in/out)
    idx = np.floor(np.arange(out_size) * (in_size / out_size)).astype(np.int64)
    return np.clip(idx, 0, in_size - 1)


def _blur_matrix(n, sigma, truncate=3):
    """Dense matrix equivalent of gaussian_filter_1d along an axis of length n.

    kernel_size = 2*ceil(truncate*sigma)+1, 'nearest' (edge-replicate) padding,
    symmetric kernel so conv == cross-correlation.  mat[i, j] = weight of input
    j in output i.
    """
    ksize = int(2 * math.ceil(truncate * sigma) + 1)
    pad = (ksize - 1) // 2
    grid = np.arange(ksize, dtype=np.float64) - (ksize - 1) / 2.0
    kernel = np.exp(-0.5 * (grid / sigma) ** 2)
    kernel = kernel / kernel.sum()
    mat = np.zeros((n, n), dtype=np.float64)
    for i in range(n):
        for k in range(ksize):
            j = int(np.clip(i + k - pad, 0, n - 1))
            mat[i, j] += kernel[k]
    return mat


def _selection_matrix(out_size, in_size):
    """0/1 matrix realizing a nearest-neighbor resize along one axis."""
    idx = _nearest_indices(out_size, in_size)
    mat = np.zeros((out_size, in_size), dtype=np.float64)
    mat[np.arange(out_size), idx] = 1.0
    return mat


@functools.lru_cache(maxsize=None)
def _finalizer_constants(H, W, Hr, Wr, sigma, factor):
    """Host-side constant matrices, cached so repeated calls / retraces reuse them."""
    h = int(math.floor(H / factor))
    w = int(math.floor(W / factor))
    hp = max(8, _round_up(h, 8))        # small-stage sublane padding
    wp = max(128, _round_up(w, 128))    # small-stage lane padding
    Hp = _round_up(H, 8)                # output sublane padding
    Wp = _round_up(W, 128)              # output lane padding (lane-dense, unmasked stores)

    # centerbias downscale: scale_factor = 1/factor, recompute_scale_factor=False
    # -> src = floor(dst * factor).  Padded rows/cols re-read a clamped index; they
    # carry zero logsumexp weight and are never copied to the output.
    dh = np.clip(np.floor(np.arange(hp) * factor), 0, H - 1).astype(np.int32)
    dw = np.clip(np.floor(np.arange(wp) * factor), 0, W - 1).astype(np.int32)

    # readout nearest-resize folded into the separable gaussian blur
    bh = _blur_matrix(h, sigma, truncate=3)                       # (h, h)  rows
    bw = _blur_matrix(w, sigma, truncate=3)                       # (w, w)  cols
    rh = _selection_matrix(h, Hr)                                 # (h, Hr)
    rw = _selection_matrix(w, Wr)                                 # (w, Wr)
    bl = np.zeros((hp, Hr), np.float64)
    bl[:h] = bh @ rh                                              # (hp, Hr)
    br = np.zeros((Wr, wp), np.float64)
    br[:, :w] = rw.T @ bw.T                                       # (Wr, wp)

    # final nearest upsample to (H, W): columns via a 0/1 matmul, rows via replication
    uw = _selection_matrix(W, w)                                  # (W, w)
    uwt = np.zeros((wp, Wp), np.float64)
    uwt[:w, :W] = uw.T                                            # (wp, Wp)
    row_src = _nearest_indices(H, h)                              # (H,) source row per out row
    cnt_h = np.zeros((hp,), np.float64)
    np.add.at(cnt_h, row_src, 1.0)                                # replication count per row
    colmask = np.zeros((Wp,), np.float64)
    colmask[:W] = 1.0
    wgt = np.outer(cnt_h, colmask)                                # (hp, Wp) logsumexp weights
    rowmap = np.full((Hp,), max(h - 1, 0), np.int32)
    rowmap[:H] = row_src.astype(np.int32)

    divisible = (h > 0) and (H % h == 0)                          # uniform row replication
    return dict(h=h, w=w, hp=hp, wp=wp, Hp=Hp, Wp=Wp, dh=dh, dw=dw,
                bl=bl, br=br, uwt=uwt, wgt=wgt, rowmap=rowmap, divisible=divisible)


def _make_kernel(*, h, H, Hp, Wp, divisible):
    fr = (H // h) if divisible else 0

    def kernel(cbw_ref, rowmap_ref, x_ref, cb_ref, bl_ref, br_ref, uwt_ref, wgt_ref,
               out_ref, up_ref):
        # 1) readout nearest-resize + separable gaussian blur: two small MXU matmuls
        #    (bf16 operands, f32 accumulation -- pre-normalization, numerically safe).
        t = jnp.dot(bl_ref[...], x_ref[...], preferred_element_type=jnp.float32)      # (hp, Wr)
        blurred = jnp.dot(t.astype(br_ref.dtype), br_ref[...],
                          preferred_element_type=jnp.float32)                         # (hp, wp)

        # 2) weighted center-bias addition at the small resolution (f32, VPU).
        small = blurred + cbw_ref[0] * cb_ref[...]                                    # (hp, wp)

        # 3) COLUMN nearest-upsample first (0/1 matmul) -> lane-dense (hp, Wp) slab.
        wide = jnp.dot(small, uwt_ref[...], preferred_element_type=jnp.float32)       # (hp, Wp)

        # 4) logsumexp of the full-resolution map, evaluated on `wide`:
        #    row i is replicated cnt_h[i] times in the output; padded rows/lanes have
        #    weight 0.  Computed AFTER the column matmul, so normalization is exact
        #    w.r.t. the values actually written, independent of matmul precision.
        m = jnp.max(wide)
        s = jnp.sum(wgt_ref[...] * jnp.exp(wide - m))
        up_ref[...] = wide - (m + jnp.log(s))

        # 5) ROW nearest-upsample = pure replication -> sublane-broadcast stores
        #    (no MXU work, bit-exact replication).
        if divisible:
            def rep(i, carry=0):
                row = up_ref[pl.ds(i, 1), :]                                          # (1, Wp)
                out_ref[pl.ds(i * fr, fr), :] = jnp.broadcast_to(row, (fr, Wp))
                return carry

            if h <= 64:
                for i in range(h):          # fully static unroll at small h (demo path)
                    rep(i)
            else:
                lax.fori_loop(0, h, rep, 0)
            if Hp > H:                      # padded rows, sliced off by the wrapper
                out_ref[H:Hp, :] = jnp.zeros((Hp - H, Wp), jnp.float32)
        else:
            # non-uniform replication (H not divisible by h): per-output-row copy
            # driven by a precomputed SMEM row map -- still exact, no matmul.
            def rep(i, carry):
                src = rowmap_ref[i]
                out_ref[pl.ds(i, 1), :] = up_ref[pl.ds(src, 1), :]
                return carry
            lax.fori_loop(0, Hp, rep, 0)

    return kernel


def finalizer_forward(readout, centerbias, *, sigma=1.0, center_bias_weight=1.0,
                      saliency_map_factor=4, blur_dtype=jnp.bfloat16):
    B, C, Hr, Wr = readout.shape
    assert C == 1, "Finalizer squeezes a single-channel readout"
    Bc, H, W = centerbias.shape
    assert Bc == B

    c = _finalizer_constants(H, W, Hr, Wr, float(sigma), int(saliency_map_factor))
    hp, wp, Hp, Wp = c["hp"], c["wp"], c["Hp"], c["Wp"]

    # nearest-neighbor downscale of the centerbias (scale_factor = 1/f), one fused gather.
    # TODO(synk): this 2-D gather stays in XLA; a BlockSpec cannot express the strided pick.
    cb_small = centerbias[:, c["dh"][:, None], c["dw"][None, :]].astype(jnp.float32)  # (B,hp,wp)

    kernel = _make_kernel(h=c["h"], H=H, Hp=Hp, Wp=Wp, divisible=c["divisible"])

    cbw = jnp.asarray([center_bias_weight], dtype=jnp.float32)       # (1,) SMEM scalar
    rowmap = jnp.asarray(c["rowmap"])                                # (Hp,) SMEM row map
    x = readout[:, 0].astype(blur_dtype)                             # (B, Hr, Wr)

    out = pl.pallas_call(
        kernel,
        out_shape=jax.ShapeDtypeStruct((B, Hp, Wp), jnp.float32),
        grid=(B,),
        in_specs=[
            pl.BlockSpec(memory_space=pltpu.MemorySpace.SMEM),        # center-bias weight
            pl.BlockSpec(memory_space=pltpu.MemorySpace.SMEM),        # row-replication map
            pl.BlockSpec((None, Hr, Wr), lambda b: (b, 0, 0)),        # raw readout (squeezed)
            pl.BlockSpec((None, hp, wp), lambda b: (b, 0, 0)),        # downscaled centerbias
            # constant matrices: constant index_map -> fetched once
            pl.BlockSpec((hp, Hr), lambda b: (0, 0)),                 # resize+blur rows
            pl.BlockSpec((Wr, wp), lambda b: (0, 0)),                 # resize+blur cols (T)
            pl.BlockSpec((wp, Wp), lambda b: (0, 0)),                 # column upsample (0/1, T)
            pl.BlockSpec((hp, Wp), lambda b: (0, 0)),                 # logsumexp weights
        ],
        out_specs=pl.BlockSpec((None, Hp, Wp), lambda b: (b, 0, 0)),
        scratch_shapes=[pltpu.VMEM((hp, Wp), jnp.float32)],           # normalized small slab
        compiler_params=pltpu.CompilerParams(
            dimension_semantics=("parallel",),                        # independent batch steps
        ),
    )(cbw, rowmap, x, cb_small,
      jnp.asarray(c["bl"], dtype=blur_dtype), jnp.asarray(c["br"], dtype=blur_dtype),
      jnp.asarray(c["uwt"], dtype=jnp.float32), jnp.asarray(c["wgt"], dtype=jnp.float32))

    if (Hp, Wp) != (H, W):
        out = out[:, :H, :W]
    return out


if __name__ == "__main__":
    key = jax.random.PRNGKey(0)
    k1, k2 = jax.random.split(key)

    B = 2
    H, W = 40, 56          # centerbias / output resolution
    Hr, Wr = 16, 24        # readout resolution (single channel, NCHW)
    readout = jax.random.normal(k1, (B, 1, Hr, Wr), dtype=jnp.float32)
    centerbias = jax.random.normal(k2, (B, H, W), dtype=jnp.float32)

    fwd = jax.jit(functools.partial(
        finalizer_forward, sigma=1.0, center_bias_weight=1.0, saliency_map_factor=4))
    out = jax.block_until_ready(fwd(readout, centerbias))

    assert out.shape == (B, H, W)
    # each output map is a log-density: exp(out) must sum to 1 over (H, W)
    probs = jnp.exp(out).sum(axis=(1, 2))
    assert bool(jnp.allclose(probs, 1.0, atol=1e-4)), probs

    print("KERNEL_OK")
</pallas_src>

<mosaic_0001>
module attributes {stable_mosaic.version = 11 : i64} {
  func.func private @main(%arg0: i32) attributes {dimension_semantics = [#tpu.dimension_semantics<core_parallel>], iteration_bounds = array<i64: 2>, tpu.core_type = #tpu.core_type<sc_scalar_subcore>, window_params = []} {
    return
  }
}

module attributes {stable_mosaic.version = 11 : i64} {
  func.func private @main(%arg0: i32) attributes {dimension_semantics = [#tpu.dimension_semantics<core_parallel>], iteration_bounds = array<i64: 2>, tpu.core_type = #tpu.core_type<sc_scalar_subcore>, window_params = []} {
    return
  }
}

module attributes {stable_mosaic.version = 11 : i64} {
  func.func @kernel(%arg0: i32, %arg1: memref<1xf32, #tpu.memory_space<smem>>, %arg2: memref<40xi32, #tpu.memory_space<smem>>, %arg3: memref<1x16x24xbf16, #tpu.memory_space<vmem>>, %arg4: memref<1x16x128xf32, #tpu.memory_space<vmem>>, %arg5: memref<16x16xbf16, #tpu.memory_space<vmem>>, %arg6: memref<24x128xbf16, #tpu.memory_space<vmem>>, %arg7: memref<128x128xf32, #tpu.memory_space<vmem>>, %arg8: memref<16x128xf32, #tpu.memory_space<vmem>>, %arg9: memref<1x40x128xf32, #tpu.memory_space<vmem>>, %arg10: memref<16x128xf32, #tpu.memory_space<vmem>>) attributes {dimension_semantics = [#tpu.dimension_semantics<parallel>], iteration_bounds = array<i64: 2>, scalar_prefetch = 0 : i64, scratch_operands = 1 : i64, tpu.core_type = #tpu.core_type<tc>, window_params = [{transform_indices = @transform_0, window_bounds = array<i64: 1>}, {transform_indices = @transform_1, window_bounds = array<i64: 40>}, {transform_indices = @transform_2, window_bounds = array<i64: 1, 16, 24>}, {transform_indices = @transform_3, window_bounds = array<i64: 1, 16, 128>}, {pipeline_mode = #tpu.pipeline_mode<synchronous>, transform_indices = @transform_4, window_bounds = array<i64: 16, 16>}, {pipeline_mode = #tpu.pipeline_mode<synchronous>, transform_indices = @transform_5, window_bounds = array<i64: 24, 128>}, {pipeline_mode = #tpu.pipeline_mode<synchronous>, transform_indices = @transform_6, window_bounds = array<i64: 128, 128>}, {pipeline_mode = #tpu.pipeline_mode<synchronous>, transform_indices = @transform_7, window_bounds = array<i64: 16, 128>}, {transform_indices = @transform_8, window_bounds = array<i64: 1, 40, 128>}]} {
    %c0 = arith.constant 0 : index
    %c0_0 = arith.constant 0 : index
    %0 = vector.load %arg5[%c0, %c0_0] : memref<16x16xbf16, #tpu.memory_space<vmem>>, vector<16x16xbf16>
    %c0_1 = arith.constant 0 : index
    %c0_2 = arith.constant 0 : index
    %c0_3 = arith.constant 0 : index
    %1 = vector.load %arg3[%c0_1, %c0_2, %c0_3] : memref<1x16x24xbf16, #tpu.memory_space<vmem>>, vector<1x16x24xbf16>
    %2 = vector.shape_cast %1 : vector<1x16x24xbf16> to vector<16x24xbf16>
    %cst = arith.constant dense<0.000000e+00> : vector<16x24xf32>
    %3 = tpu.matmul %0, %2, %cst {dimension_numbers = #tpu.dot_dimension_numbers<[1], [0], [0], [1], [0, 0, 1, 1], [], []>} : vector<16x16xbf16>, vector<16x24xbf16>, vector<16x24xf32> -> vector<16x24xf32>
    %4 = arith.truncf %3 : vector<16x24xf32> to vector<16x24xbf16>
    %c0_4 = arith.constant 0 : index
    %c0_5 = arith.constant 0 : index
    %5 = vector.load %arg6[%c0_4, %c0_5] : memref<24x128xbf16, #tpu.memory_space<vmem>>, vector<24x128xbf16>
    %cst_6 = arith.constant dense<0.000000e+00> : vector<16x128xf32>
    %6 = tpu.matmul %4, %5, %cst_6 {dimension_numbers = #tpu.dot_dimension_numbers<[1], [0], [0], [1], [0, 0, 1, 1], [], []>} : vector<16x24xbf16>, vector<24x128xbf16>, vector<16x128xf32> -> vector<16x128xf32>
    %c0_7 = arith.constant 0 : index
    %7 = memref.load %arg1[%c0_7] : memref<1xf32, #tpu.memory_space<smem>>
    %c0_8 = arith.constant 0 : index
    %c0_9 = arith.constant 0 : index
    %c0_10 = arith.constant 0 : index
    %8 = vector.load %arg4[%c0_8, %c0_9, %c0_10] : memref<1x16x128xf32, #tpu.memory_space<vmem>>, vector<1x16x128xf32>
    %9 = vector.shape_cast %8 : vector<1x16x128xf32> to vector<16x128xf32>
    %10 = vector.broadcast %7 : f32 to vector<16x128xf32>
    %11 = arith.mulf %10, %9 : vector<16x128xf32>
    %12 = arith.addf %6, %11 : vector<16x128xf32>
    %c0_11 = arith.constant 0 : index
    %c0_12 = arith.constant 0 : index
    %13 = vector.load %arg7[%c0_11, %c0_12] : memref<128x128xf32, #tpu.memory_space<vmem>>, vector<128x128xf32>
    %cst_13 = arith.constant dense<0.000000e+00> : vector<16x128xf32>
    %14 = tpu.matmul %12, %13, %cst_13 {dimension_numbers = #tpu.dot_dimension_numbers<[1], [0], [0], [1], [0, 0, 1, 1], [], []>} : vector<16x128xf32>, vector<128x128xf32>, vector<16x128xf32> -> vector<16x128xf32>
    %15 = vector.shape_cast %14 : vector<16x128xf32> to vector<1x16x128xf32>
    %cst_14 = arith.constant dense<0xFF800000> : vector<1xf32>
    %16 = vector.multi_reduction <maximumf>, %15, %cst_14 [1, 2] : vector<1x16x128xf32> to vector<1xf32>
    %17 = vector.shape_cast %16 : vector<1xf32> to vector<1x1x1xf32>
    %18 = vector.extract %17[0, 0, 0] : f32 from vector<1x1x1xf32>
    %c0_15 = arith.constant 0 : index
    %c0_16 = arith.constant 0 : index
    %19 = vector.load %arg8[%c0_15, %c0_16] : memref<16x128xf32, #tpu.memory_space<vmem>>, vector<16x128xf32>
    %20 = vector.broadcast %18 : f32 to vector<16x128xf32>
    %21 = arith.subf %14, %20 : vector<16x128xf32>
    %22 = math.exp %21 : vector<16x128xf32>
    %23 = arith.mulf %19, %22 : vector<16x128xf32>
    %24 = vector.shape_cast %23 : vector<16x128xf32> to vector<1x16x128xf32>
    %cst_17 = arith.constant dense<0.000000e+00> : vector<1xf32>
    %25 = vector.multi_reduction <add>, %24, %cst_17 [1, 2] : vector<1x16x128xf32> to vector<1xf32>
    %26 = vector.shape_cast %25 : vector<1xf32> to vector<1x1x1xf32>
    %27 = vector.extract %26[0, 0, 0] : f32 from vector<1x1x1xf32>
    %28 = math.log %27 : f32
    %29 = arith.addf %18, %28 : f32
    %30 = vector.broadcast %29 : f32 to vector<16x128xf32>
    %31 = arith.subf %14, %30 : vector<16x128xf32>
    %c0_18 = arith.constant 0 : index
    %c0_19 = arith.constant 0 : index
    %32 = vector.load %arg10[%c0_18, %c0_19] : memref<16x128xf32, #tpu.memory_space<vmem>>, vector<16x128xf32>
    tpu.vector_store %arg10[%c0_18, %c0_19], %31 {strides = array<i32>} : memref<16x128xf32, #tpu.memory_space<vmem>>, vector<16x128xf32>,
    %c0_20 = arith.constant 0 : index
    %c0_21 = arith.constant 0 : index
    %33 = vector.load %arg10[%c0_20, %c0_21] : memref<16x128xf32, #tpu.memory_space<vmem>>, vector<1x128xf32>
    %34 = vector.shape_cast %33 : vector<1x128xf32> to vector<1x128xf32>
    %35 = vector.broadcast %34 : vector<1x128xf32> to vector<4x128xf32>
    %c0_22 = arith.constant 0 : index
    %c0_23 = arith.constant 0 : index
    %c0_24 = arith.constant 0 : index
    %36 = vector.load %arg9[%c0_22, %c0_23, %c0_24] : memref<1x40x128xf32, #tpu.memory_space<vmem>>, vector<1x4x128xf32>
    %37 = vector.shape_cast %36 : vector<1x4x128xf32> to vector<4x128xf32>
    %38 = vector.shape_cast %35 : vector<4x128xf32> to vector<1x4x128xf32>
    tpu.vector_store %arg9[%c0_22, %c0_23, %c0_24], %38 {strides = array<i32>} : memref<1x40x128xf32, #tpu.memory_space<vmem>>, vector<1x4x128xf32>,
    %c1 = arith.constant 1 : index
    %c0_25 = arith.constant 0 : index
    %39 = vector.load %arg10[%c1, %c0_25] : memref<16x128xf32, #tpu.memory_space<vmem>>, vector<1x128xf32>
    %40 = vector.shape_cast %39 : vector<1x128xf32> to vector<1x128xf32>
    %41 = vector.broadcast %40 : vector<1x128xf32> to vector<4x128xf32>
    %c0_26 = arith.constant 0 : index
    %c4 = arith.constant 4 : index
    %c0_27 = arith.constant 0 : index
    %42 = vector.load %arg9[%c0_26, %c4, %c0_27] : memref<1x40x128xf32, #tpu.memory_space<vmem>>, vector<1x4x128xf32>
    %43 = vector.shape_cast %42 : vector<1x4x128xf32> to vector<4x128xf32>
    %44 = vector.shape_cast %41 : vector<4x128xf32> to vector<1x4x128xf32>
    tpu.vector_store %arg9[%c0_26, %c4, %c0_27], %44 {strides = array<i32>} : memref<1x40x128xf32, #tpu.memory_space<vmem>>, vector<1x4x128xf32>,
    %c2 = arith.constant 2 : index
    %c0_28 = arith.constant 0 : index
    %45 = vector.load %arg10[%c2, %c0_28] : memref<16x128xf32, #tpu.memory_space<vmem>>, vector<1x128xf32>
    %46 = vector.shape_cast %45 : vector<1x128xf32> to vector<1x128xf32>
    %47 = vector.broadcast %46 : vector<1x128xf32> to vector<4x128xf32>
    %c0_29 = arith.constant 0 : index
    %c8 = arith.constant 8 : index
    %c0_30 = arith.constant 0 : index
    %48 = vector.load %arg9[%c0_29, %c8, %c0_30] : memref<1x40x128xf32, #tpu.memory_space<vmem>>, vector<1x4x128xf32>
    %49 = vector.shape_cast %48 : vector<1x4x128xf32> to vector<4x128xf32>
    %50 = vector.shape_cast %47 : vector<4x128xf32> to vector<1x4x128xf32>
    tpu.vector_store %arg9[%c0_29, %c8, %c0_30], %50 {strides = array<i32>} : memref<1x40x128xf32, #tpu.memory_space<vmem>>, vector<1x4x128xf32>,
    %c3 = arith.constant 3 : index
    %c0_31 = arith.constant 0 : index
    %51 = vector.load %arg10[%c3, %c0_31] : memref<16x128xf32, #tpu.memory_space<vmem>>, vector<1x128xf32>
    %52 = vector.shape_cast %51 : vector<1x128xf32> to vector<1x128xf32>
    %53 = vector.broadcast %52 : vector<1x128xf32> to vector<4x128xf32>
    %c0_32 = arith.constant 0 : index
    %c12 = arith.constant 12 : index
    %c0_33 = arith.constant 0 : index
    %54 = vector.load %arg9[%c0_32, %c12, %c0_33] : memref<1x40x128xf32, #tpu.memory_space<vmem>>, vector<1x4x128xf32>
    %55 = vector.shape_cast %54 : vector<1x4x128xf32> to vector<4x128xf32>
    %56 = vector.shape_cast %53 : vector<4x128xf32> to vector<1x4x128xf32>
    tpu.vector_store %arg9[%c0_32, %c12, %c0_33], %56 {strides = array<i32>} : memref<1x40x128xf32, #tpu.memory_space<vmem>>, vector<1x4x128xf32>,
    %c4_34 = arith.constant 4 : index
    %c0_35 = arith.constant 0 : index
    %57 = vector.load %arg10[%c4_34, %c0_35] : memref<16x128xf32, #tpu.memory_space<vmem>>, vector<1x128xf32>
    %58 = vector.shape_cast %57 : vector<1x128xf32> to vector<1x128xf32>
    %59 = vector.broadcast %58 : vector<1x128xf32> to vector<4x128xf32>
    %c0_36 = arith.constant 0 : index
    %c16 = arith.constant 16 : index
    %c0_37 = arith.constant 0 : index
    %60 = vector.load %arg9[%c0_36, %c16, %c0_37] : memref<1x40x128xf32, #tpu.memory_space<vmem>>, vector<1x4x128xf32>
    %61 = vector.shape_cast %60 : vector<1x4x128xf32> to vector<4x128xf32>
    %62 = vector.shape_cast %59 : vector<4x128xf32> to vector<1x4x128xf32>
    tpu.vector_store %arg9[%c0_36, %c16, %c0_37], %62 {strides = array<i32>} : memref<1x40x128xf32, #tpu.memory_space<vmem>>, vector<1x4x128xf32>,
    %c5 = arith.constant 5 : index
    %c0_38 = arith.constant 0 : index
    %63 = vector.load %arg10[%c5, %c0_38] : memref<16x128xf32, #tpu.memory_space<vmem>>, vector<1x128xf32>
    %64 = vector.shape_cast %63 : vector<1x128xf32> to vector<1x128xf32>
    %65 = vector.broadcast %64 : vector<1x128xf32> to vector<4x128xf32>
    %c0_39 = arith.constant 0 : index
    %c20 = arith.constant 20 : index
    %c0_40 = arith.constant 0 : index
    %66 = vector.load %arg9[%c0_39, %c20, %c0_40] : memref<1x40x128xf32, #tpu.memory_space<vmem>>, vector<1x4x128xf32>
    %67 = vector.shape_cast %66 : vector<1x4x128xf32> to vector<4x128xf32>
    %68 = vector.shape_cast %65 : vector<4x128xf32> to vector<1x4x128xf32>
    tpu.vector_store %arg9[%c0_39, %c20, %c0_40], %68 {strides = array<i32>} : memref<1x40x128xf32, #tpu.memory_space<vmem>>, vector<1x4x128xf32>,
    %c6 = arith.constant 6 : index
    %c0_41 = arith.constant 0 : index
    %69 = vector.load %arg10[%c6, %c0_41] : memref<16x128xf32, #tpu.memory_space<vmem>>, vector<1x128xf32>
    %70 = vector.shape_cast %69 : vector<1x128xf32> to vector<1x128xf32>
    %71 = vector.broadcast %70 : vector<1x128xf32> to vector<4x128xf32>
    %c0_42 = arith.constant 0 : index
    %c24 = arith.constant 24 : index
    %c0_43 = arith.constant 0 : index
    %72 = vector.load %arg9[%c0_42, %c24, %c0_43] : memref<1x40x128xf32, #tpu.memory_space<vmem>>, vector<1x4x128xf32>
    %73 = vector.shape_cast %72 : vector<1x4x128xf32> to vector<4x128xf32>
    %74 = vector.shape_cast %71 : vector<4x128xf32> to vector<1x4x128xf32>
    tpu.vector_store %arg9[%c0_42, %c24, %c0_43], %74 {strides = array<i32>} : memref<1x40x128xf32, #tpu.memory_space<vmem>>, vector<1x4x128xf32>,
    %c7 = arith.constant 7 : index
    %c0_44 = arith.constant 0 : index
    %75 = vector.load %arg10[%c7, %c0_44] : memref<16x128xf32, #tpu.memory_space<vmem>>, vector<1x128xf32>
    %76 = vector.shape_cast %75 : vector<1x128xf32> to vector<1x128xf32>
    %77 = vector.broadcast %76 : vector<1x128xf32> to vector<4x128xf32>
    %c0_45 = arith.constant 0 : index
    %c28 = arith.constant 28 : index
    %c0_46 = arith.constant 0 : index
    %78 = vector.load %arg9[%c0_45, %c28, %c0_46] : memref<1x40x128xf32, #tpu.memory_space<vmem>>, vector<1x4x128xf32>
    %79 = vector.shape_cast %78 : vector<1x4x128xf32> to vector<4x128xf32>
    %80 = vector.shape_cast %77 : vector<4x128xf32> to vector<1x4x128xf32>
    tpu.vector_store %arg9[%c0_45, %c28, %c0_46], %80 {strides = array<i32>} : memref<1x40x128xf32, #tpu.memory_space<vmem>>, vector<1x4x128xf32>,
    %c8_47 = arith.constant 8 : index
    %c0_48 = arith.constant 0 : index
    %81 = vector.load %arg10[%c8_47, %c0_48] : memref<16x128xf32, #tpu.memory_space<vmem>>, vector<1x128xf32>
    %82 = vector.shape_cast %81 : vector<1x128xf32> to vector<1x128xf32>
    %83 = vector.broadcast %82 : vector<1x128xf32> to vector<4x128xf32>
    %c0_49 = arith.constant 0 : index
    %c32 = arith.constant 32 : index
    %c0_50 = arith.constant 0 : index
    %84 = vector.load %arg9[%c0_49, %c32, %c0_50] : memref<1x40x128xf32, #tpu.memory_space<vmem>>, vector<1x4x128xf32>
    %85 = vector.shape_cast %84 : vector<1x4x128xf32> to vector<4x128xf32>
    %86 = vector.shape_cast %83 : vector<4x128xf32> to vector<1x4x128xf32>
    tpu.vector_store %arg9[%c0_49, %c32, %c0_50], %86 {strides = array<i32>} : memref<1x40x128xf32, #tpu.memory_space<vmem>>, vector<1x4x128xf32>,
    %c9 = arith.constant 9 : index
    %c0_51 = arith.constant 0 : index
    %87 = vector.load %arg10[%c9, %c0_51] : memref<16x128xf32, #tpu.memory_space<vmem>>, vector<1x128xf32>
    %88 = vector.shape_cast %87 : vector<1x128xf32> to vector<1x128xf32>
    %89 = vector.broadcast %88 : vector<1x128xf32> to vector<4x128xf32>
    %c0_52 = arith.constant 0 : index
    %c36 = arith.constant 36 : index
    %c0_53 = arith.constant 0 : index
    %90 = vector.load %arg9[%c0_52, %c36, %c0_53] : memref<1x40x128xf32, #tpu.memory_space<vmem>>, vector<1x4x128xf32>
    %91 = vector.shape_cast %90 : vector<1x4x128xf32> to vector<4x128xf32>
    %92 = vector.shape_cast %89 : vector<4x128xf32> to vector<1x4x128xf32>
    tpu.vector_store %arg9[%c0_52, %c36, %c0_53], %92 {strides = array<i32>} : memref<1x40x128xf32, #tpu.memory_space<vmem>>, vector<1x4x128xf32>,
    return
  }
  func.func @transform_0(%arg0: i32) -> i32 {
    %c0_i32 = arith.constant 0 : i32
    %c0_i32_0 = arith.constant 0 : i32
    return %c0_i32 : i32
  }
  func.func @transform_1(%arg0: i32) -> i32 {
    %c0_i32 = arith.constant 0 : i32
    %c0_i32_0 = arith.constant 0 : i32
    return %c0_i32 : i32
  }
  func.func @transform_2(%arg0: i32) -> (i32, i32, i32) {
    %c0_i32 = arith.constant 0 : i32
    %c0_i32_0 = arith.constant 0 : i32
    %c0_i32_1 = arith.constant 0 : i32
    return %arg0, %c0_i32, %c0_i32_0 : i32, i32, i32
  }
  func.func @transform_3(%arg0: i32) -> (i32, i32, i32) {
    %c0_i32 = arith.constant 0 : i32
    %c0_i32_0 = arith.constant 0 : i32
    %c0_i32_1 = arith.constant 0 : i32
    return %arg0, %c0_i32, %c0_i32_0 : i32, i32, i32
  }
  func.func @transform_4(%arg0: i32) -> (i32, i32) {
    %c0_i32 = arith.constant 0 : i32
    %c0_i32_0 = arith.constant 0 : i32
    %c0_i32_1 = arith.constant 0 : i32
    return %c0_i32, %c0_i32_0 : i32, i32
  }
  func.func @transform_5(%arg0: i32) -> (i32, i32) {
    %c0_i32 = arith.constant 0 : i32
    %c0_i32_0 = arith.constant 0 : i32
    %c0_i32_1 = arith.constant 0 : i32
    return %c0_i32, %c0_i32_0 : i32, i32
  }
  func.func @transform_6(%arg0: i32) -> (i32, i32) {
    %c0_i32 = arith.constant 0 : i32
    %c0_i32_0 = arith.constant 0 : i32
    %c0_i32_1 = arith.constant 0 : i32
    return %c0_i32, %c0_i32_0 : i32, i32
  }
  func.func @transform_7(%arg0: i32) -> (i32, i32) {
    %c0_i32 = arith.constant 0 : i32
    %c0_i32_0 = arith.constant 0 : i32
    %c0_i32_1 = arith.constant 0 : i32
    return %c0_i32, %c0_i32_0 : i32, i32
  }
  func.func @transform_8(%arg0: i32) -> (i32, i32, i32) {
    %c0_i32 = arith.constant 0 : i32
    %c0_i32_0 = arith.constant 0 : i32
    %c0_i32_1 = arith.constant 0 : i32
    return %arg0, %c0_i32, %c0_i32_0 : i32, i32, i32
  }
}

</mosaic_0001>

<llo_original>
// kernel: finalizer_forward.1
$region0: #{finalizer_forward.1}
  #allocation0 [shape = 'u32[]', space=smem, size = 0x4, offset = 0x4, fixed_abs, tag = 'smem constant byte address 0x4 - core index']
  #allocation1 [shape = 'u32[144,128]{1,0:T(1,128)}', space=vmem, size = 0x12000, scoped, tag = 'internal scratch']
  #allocation2 [shape = 'f32[16,128]{1,0:T(8,128)}', space=vmem, size = 0x2000, scoped, tag = 'scratch operand']
  #allocation3 [shape = 'f32[1]{0:T(128)S(6)}', space=smem, size = 0x200, scoped, tag = 'scoped memory for finalizer_forward.1']
  %s0 = inlined_call_operand.<no memory space> [shape: f32[1], index: 0, kind: input, shape index: {}]
  %s1 = inlined_call_operand.vmem [shape: s32[40], index: 1, kind: input, shape index: {}]
  %s2 = inlined_call_operand.vmem [shape: bf16[2,16,24], index: 2, kind: input, shape index: {}]
  %s3 = inlined_call_operand.vmem [shape: f32[2,16,128], index: 3, kind: input, shape index: {}]
  %s4 = inlined_call_operand.vmem [shape: bf16[16,16], index: 4, kind: input, shape index: {}]
  %s5 = inlined_call_operand.vmem [shape: bf16[24,128], index: 5, kind: input, shape index: {}]
  %s6 = inlined_call_operand.vmem [shape: f32[128,128], index: 6, kind: input, shape index: {}]
  %s7 = inlined_call_operand.vmem [shape: f32[16,128], index: 7, kind: input, shape index: {}]
  %s8 = inlined_call_operand.hbm [shape: f32[2,40,128], index: 8, kind: output, shape index: {}]
  %s9 = sld [smem:[#allocation0]]
  $region69: #{finalizer_forward.1} parent=0
    _
  %s11 = ssub.s32 1, %s9
  %s12 = scalar_select 0, %s11, %s9
  %13 = sst [smem:[#allocation3]] %s0
  $region1: #{finalizer_forward.1} parent=0
    #allocation4 [shape = 'u8[512]{0}', space=smem, size = 0x200, scoped, tag = 'input window, operand 1, single buffered']
    #allocation5 [shape = 's32[2]{0}', space=sflag, size = 0x8, scoped, tag = 'scoped memory for finalizer_forward.1']
    #allocation6 [shape = 's32[2]{0}', space=sflag, size = 0x8, scoped, tag = 'scoped memory for finalizer_forward.1']
    #allocation7 [shape = 'u8[40960]{0}', space=vmem, size = 0xa000, scoped, tag = 'output window, operand 0']
    %14 = vsyncpa [#allocation6], 0
    %15 = vsyncpa [#allocation5], 0
    %s16 = scalar_lea.sflag [#allocation5], 1
    %17 = vsyncpa %s16, 0
    loop: start=0, step=1, limit=4
    $region2: #{finalizer_forward.1} parent=1 // loop_pre_header
      _
    $region3: #{finalizer_forward.1} parent=1 // loop_header
      %s19 = sphi 0, %s23
      %p20 = scmp.ge.s32.totalorder %s19, 4
      %s27 = sphi 0, %s27
      %s29 = sphi 0, %s27
      %s30 = sphi 0, %s29
      %s44 = sphi 0, %s30
      %s48 = sphi 0, %s48
      %s50 = sphi 0, %s48
      %s51 = sphi 0, %s50
      %s65 = sphi 0, %s51
      %s71 = sphi 0, %s73
      %s74 = sphi 0, %s71
      %s75 = sphi 0, %s74
      %s91 = sphi 0, %s75
      %s97 = sphi 0, %s99
      %s100 = sphi 0, %s97
      %s101 = sphi 0, %s100
      %s117 = sphi 0, %s101
      %s121 = sphi 0, %s121
      %s123 = sphi 0, %s121
      %s124 = sphi 0, %s123
      %s138 = sphi 0, %s124
      %s142 = sphi 0, %s142
      %s144 = sphi 0, %s142
      %s145 = sphi 0, %s144
      %s159 = sphi 0, %s145
      %s163 = sphi 0, %s163
      %s165 = sphi 0, %s163
      %s166 = sphi 0, %s165
      %s180 = sphi 0, %s166
      %s184 = sphi 0, %s184
      %s186 = sphi 0, %s184
      %s187 = sphi 0, %s186
      %s201 = sphi 0, %s187
      %s207 = sphi 0, %s209
      %s210 = sphi 0, %s207
      %s211 = sphi 0, %s210
      %s227 = sphi 0, %s211
    $region4: #{finalizer_forward.1} parent=1 // loop_header_branch
      %22 = sbr.rel (%p20) target = $region8
    $region5: #{finalizer_forward.1} parent=1 // loop_body
      %s24 = ssub.s32 %s19, 1
      %s25 = ssub.s32 %s19, 2
      %s26 = sadd.s32 %s19, 1
      %s28 = sadd.s32 %s27, 1
      %p31 = scmp.eq.s32.totalorder %s19, 1
      %p32 = scmp.ne.s32.totalorder %s27, %s29
      %p33 = scmp.eq.s32.totalorder %s19, 0
      %p34 = por %p32, %p33
      %p35 = scmp.ne.s32.totalorder %s27, %s29
      %p36 = scmp.eq.s32.totalorder %s24, 1
      %p37 = por %p35, %p36
      %p38 = scmp.ne.s32.totalorder %s29, %s30
      %p39 = scmp.eq.s32.totalorder %s24, 0
      %p40 = por %p38, %p39
      %p41 = scmp.ne.s32.totalorder %s29, %s30
      %p42 = scmp.eq.s32.totalorder %s25, 1
      %p43 = por %p41, %p42
      %p45 = scmp.ne.s32.totalorder %s30, %s44
      %p46 = scmp.eq.s32.totalorder %s25, 0
      %p47 = por %p45, %p46
      %s49 = sadd.s32 %s48, 1
      %p52 = scmp.eq.s32.totalorder %s19, 1
      %p53 = scmp.ne.s32.totalorder %s48, %s50
      %p54 = scmp.eq.s32.totalorder %s19, 0
      %p55 = por %p53, %p54
      %p56 = scmp.ne.s32.totalorder %s48, %s50
      %p57 = scmp.eq.s32.totalorder %s24, 1
      %p58 = por %p56, %p57
      %p59 = scmp.ne.s32.totalorder %s50, %s51
      %p60 = scmp.eq.s32.totalorder %s24, 0
      %p61 = por %p59, %p60
      %p62 = scmp.ne.s32.totalorder %s50, %s51
      %p63 = scmp.eq.s32.totalorder %s25, 1
      %p64 = por %p62, %p63
      %p66 = scmp.ne.s32.totalorder %s51, %s65
      %p67 = scmp.eq.s32.totalorder %s25, 0
      %p68 = por %p66, %p67
      %s69 = ssub.s32 %s19, %s26
      %p70 = scmp.eq.s32.totalorder %s69, 0
      %s72 = sadd.s32 %s71, 1
      %s73 = scalar_select %p70, %s71, %s72
      %p76 = pneg %p70
      %p77 = scmp.eq.s32.totalorder %s19, 1
      %p78 = por %p76, %p77
      %p79 = scmp.ne.s32.totalorder %s71, %s74
      %p80 = scmp.eq.s32.totalorder %s19, 0
      %p81 = por %p79, %p80
      %p82 = scmp.ne.s32.totalorder %s71, %s74
      %p83 = scmp.eq.s32.totalorder %s24, 1
      %p84 = por %p82, %p83
      %p85 = scmp.ne.s32.totalorder %s74, %s75
      %p86 = scmp.eq.s32.totalorder %s24, 0
      %p87 = por %p85, %p86
      %p88 = scmp.ne.s32.totalorder %s74, %s75
      %p89 = scmp.eq.s32.totalorder %s25, 1
      %p90 = por %p88, %p89
      %p92 = scmp.ne.s32.totalorder %s75, %s91
      %p93 = scmp.eq.s32.totalorder %s25, 0
      %p94 = por %p92, %p93
      %s95 = ssub.s32 %s19, %s26
      %p96 = scmp.eq.s32.totalorder %s95, 0
      %s98 = sadd.s32 %s97, 1
      %s99 = scalar_select %p96, %s97, %s98
      %p102 = pneg %p96
      %p103 = scmp.eq.s32.totalorder %s19, 1
      %p104 = por %p102, %p103
      %p105 = scmp.ne.s32.totalorder %s97, %s100
      %p106 = scmp.eq.s32.totalorder %s19, 0
      %p107 = por %p105, %p106
      %p108 = scmp.ne.s32.totalorder %s97, %s100
      %p109 = scmp.eq.s32.totalorder %s24, 1
      %p110 = por %p108, %p109
      %p111 = scmp.ne.s32.totalorder %s100, %s101
      %p112 = scmp.eq.s32.totalorder %s24, 0
      %p113 = por %p111, %p112
      %p114 = scmp.ne.s32.totalorder %s100, %s101
      %p115 = scmp.eq.s32.totalorder %s25, 1
      %p116 = por %p114, %p115
      %p118 = scmp.ne.s32.totalorder %s101, %s117
      %p119 = scmp.eq.s32.totalorder %s25, 0
      %p120 = por %p118, %p119
      %s122 = sadd.s32 %s121, 1
      %p125 = scmp.eq.s32.totalorder %s19, 1
      %p126 = scmp.ne.s32.totalorder %s121, %s123
      %p127 = scmp.eq.s32.totalorder %s19, 0
      %p128 = por %p126, %p127
      %p129 = scmp.ne.s32.totalorder %s121, %s123
      %p130 = scmp.eq.s32.totalorder %s24, 1
      %p131 = por %p129, %p130
      %p132 = scmp.ne.s32.totalorder %s123, %s124
      %p133 = scmp.eq.s32.totalorder %s24, 0
      %p134 = por %p132, %p133
      %p135 = scmp.ne.s32.totalorder %s123, %s124
      %p136 = scmp.eq.s32.totalorder %s25, 1
      %p137 = por %p135, %p136
      %p139 = scmp.ne.s32.totalorder %s124, %s138
      %p140 = scmp.eq.s32.totalorder %s25, 0
      %p141 = por %p139, %p140
      %s143 = sadd.s32 %s142, 1
      %p146 = scmp.eq.s32.totalorder %s19, 1
      %p147 = scmp.ne.s32.totalorder %s142, %s144
      %p148 = scmp.eq.s32.totalorder %s19, 0
      %p149 = por %p147, %p148
      %p150 = scmp.ne.s32.totalorder %s142, %s144
      %p151 = scmp.eq.s32.totalorder %s24, 1
      %p152 = por %p150, %p151
      %p153 = scmp.ne.s32.totalorder %s144, %s145
      %p154 = scmp.eq.s32.totalorder %s24, 0
      %p155 = por %p153, %p154
      %p156 = scmp.ne.s32.totalorder %s144, %s145
      %p157 = scmp.eq.s32.totalorder %s25, 1
      %p158 = por %p156, %p157
      %p160 = scmp.ne.s32.totalorder %s145, %s159
      %p161 = scmp.eq.s32.totalorder %s25, 0
      %p162 = por %p160, %p161
      %s164 = sadd.s32 %s163, 1
      %p167 = scmp.eq.s32.totalorder %s19, 1
      %p168 = scmp.ne.s32.totalorder %s163, %s165
      %p169 = scmp.eq.s32.totalorder %s19, 0
      %p170 = por %p168, %p169
      %p171 = scmp.ne.s32.totalorder %s163, %s165
      %p172 = scmp.eq.s32.totalorder %s24, 1
      %p173 = por %p171, %p172
      %p174 = scmp.ne.s32.totalorder %s165, %s166
      %p175 = scmp.eq.s32.totalorder %s24, 0
      %p176 = por %p174, %p175
      %p177 = scmp.ne.s32.totalorder %s165, %s166
      %p178 = scmp.eq.s32.totalorder %s25, 1
      %p179 = por %p177, %p178
      %p181 = scmp.ne.s32.totalorder %s166, %s180
      %p182 = scmp.eq.s32.totalorder %s25, 0
      %p183 = por %p181, %p182
      %s185 = sadd.s32 %s184, 1
      %p188 = scmp.eq.s32.totalorder %s19, 1
      %p189 = scmp.ne.s32.totalorder %s184, %s186
      %p190 = scmp.eq.s32.totalorder %s19, 0
      %p191 = por %p189, %p190
      %p192 = scmp.ne.s32.totalorder %s184, %s186
      %p193 = scmp.eq.s32.totalorder %s24, 1
      %p194 = por %p192, %p193
      %p195 = scmp.ne.s32.totalorder %s186, %s187
      %p196 = scmp.eq.s32.totalorder %s24, 0
      %p197 = por %p195, %p196
      %p198 = scmp.ne.s32.totalorder %s186, %s187
      %p199 = scmp.eq.s32.totalorder %s25, 1
      %p200 = por %p198, %p199
      %p202 = scmp.ne.s32.totalorder %s187, %s201
      %p203 = scmp.eq.s32.totalorder %s25, 0
      %p204 = por %p202, %p203
      %s205 = ssub.s32 %s19, %s26
      %p206 = scmp.eq.s32.totalorder %s205, 0
      %s208 = sadd.s32 %s207, 1
      %s209 = scalar_select %p206, %s207, %s208
      %p212 = pneg %p206
      %p213 = scmp.eq.s32.totalorder %s19, 1
      %p214 = por %p212, %p213
      %p215 = scmp.ne.s32.totalorder %s207, %s210
      %p216 = scmp.eq.s32.totalorder %s19, 0
      %p217 = por %p215, %p216
      %p218 = scmp.ne.s32.totalorder %s207, %s210
      %p219 = scmp.eq.s32.totalorder %s24, 1
      %p220 = por %p218, %p219
      %p221 = scmp.ne.s32.totalorder %s210, %s211
      %p222 = scmp.eq.s32.totalorder %s24, 0
      %p223 = por %p221, %p222
      %p224 = scmp.ne.s32.totalorder %s210, %s211
      %p225 = scmp.eq.s32.totalorder %s25, 1
      %p226 = por %p224, %p225
      %p228 = scmp.ne.s32.totalorder %s211, %s227
      %p229 = scmp.eq.s32.totalorder %s25, 0
      %p230 = por %p228, %p229
      %p231 = scmp.le.s32.totalorder 1, %s19
      %p232 = scmp.lt.s32.totalorder %s19, 3
      %p233 = pnand %p231, %p232
      %p234 = pneg %p233
      // Predicated region
      $region9: #{finalizer_forward.1} parent=5 // pred_check
        _
      $region10: #{finalizer_forward.1} parent=5 // pred_check_branch
        %236 = sbr.rel (%p233) target = $region12
      $region11: #{finalizer_forward.1} parent=5 // pred_region
        %s237 = ssub.s32 %s19, 1
        // Predicated region
        $region13: #{finalizer_forward.1} parent=11 // pred_check
          %p238 = pneg %p40
        $region14: #{finalizer_forward.1} parent=11 // pred_check_branch
          %240 = sbr.rel (%p238) target = $region16
        $region15: #{finalizer_forward.1} parent=11 // pred_region
          _
        $region16: #{finalizer_forward.1} parent=11 // pred_fallthru
          _
        // Predicated region
        $region17: #{finalizer_forward.1} parent=11 // pred_check
          %p241 = pneg %p61
        $region18: #{finalizer_forward.1} parent=11 // pred_check_branch
          %243 = sbr.rel (%p241) target = $region20
        $region19: #{finalizer_forward.1} parent=11 // pred_region
          %s245 = ssub.s32 16, 16
          %246 = vsyncadd [#allocation6], %s245
          %s248 = sshll.u32 %s1, 4
          %s249 = int_to_ptr.vmem [resolvable:$true] %s248
          %251 = dma.vmem_to_smem %s249, 16, [#allocation4], [#allocation6]
        $region20: #{finalizer_forward.1} parent=11 // pred_fallthru
          _
        // Predicated region
        $region21: #{finalizer_forward.1} parent=11 // pred_check
          %p252 = pneg %p134
        $region22: #{finalizer_forward.1} parent=11 // pred_check_branch
          %254 = sbr.rel (%p252) target = $region24
        $region23: #{finalizer_forward.1} parent=11 // pred_region
          _
        $region24: #{finalizer_forward.1} parent=11 // pred_fallthru
          _
        // Predicated region
        $region25: #{finalizer_forward.1} parent=11 // pred_check
          %p255 = pneg %p155
        $region26: #{finalizer_forward.1} parent=11 // pred_check_branch
          %257 = sbr.rel (%p255) target = $region28
        $region27: #{finalizer_forward.1} parent=11 // pred_region
          _
        $region28: #{finalizer_forward.1} parent=11 // pred_fallthru
          _
        // Predicated region
        $region29: #{finalizer_forward.1} parent=11 // pred_check
          %p258 = pneg %p176
        $region30: #{finalizer_forward.1} parent=11 // pred_check_branch
          %260 = sbr.rel (%p258) target = $region32
        $region31: #{finalizer_forward.1} parent=11 // pred_region
          _
        $region32: #{finalizer_forward.1} parent=11 // pred_fallthru
          _
        // Predicated region
        $region33: #{finalizer_forward.1} parent=11 // pred_check
          %p261 = pneg %p197
        $region34: #{finalizer_forward.1} parent=11 // pred_check_branch
          %263 = sbr.rel (%p261) target = $region36
        $region35: #{finalizer_forward.1} parent=11 // pred_region
          _
        $region36: #{finalizer_forward.1} parent=11 // pred_fallthru
          _
      $region12: #{finalizer_forward.1} parent=5 // pred_fallthru
        _
      %p264 = scmp.lt.s32.totalorder %s19, 2
      // Predicated region
      $region37: #{finalizer_forward.1} parent=5 // pred_check
        %p265 = pneg %p264
      $region38: #{finalizer_forward.1} parent=5 // pred_check_branch
        %267 = sbr.rel (%p265) target = $region40
      $region39: #{finalizer_forward.1} parent=5 // pred_region
        // Predicated region
        $region41: #{finalizer_forward.1} parent=39 // pred_check
          %p268 = pneg %p81
        $region42: #{finalizer_forward.1} parent=39 // pred_check_branch
          %270 = sbr.rel (%p268) target = $region44
        $region43: #{finalizer_forward.1} parent=39 // pred_region
          %p271 = scmp.lt.s32.totalorder %s19, 1
          %s272 = scalar_select %p271, %s19, 1
          %s273 = smul.addr %s272, 2
          %s274 = smul.addr %s273, 4
          %s275 = scalar_lea.vmem %s2, %s274
        $region44: #{finalizer_forward.1} parent=39 // pred_fallthru
          _
        // Predicated region
        $region45: #{finalizer_forward.1} parent=39 // pred_check
          %p276 = pneg %p107
        $region46: #{finalizer_forward.1} parent=39 // pred_check_branch
          %278 = sbr.rel (%p276) target = $region48
        $region47: #{finalizer_forward.1} parent=39 // pred_region
          %p279 = scmp.lt.s32.totalorder %s19, 1
          %s280 = scalar_select %p279, %s19, 1
          %s281 = smul.addr %s280, 2
          %s282 = smul.addr %s281, 8
          %s283 = scalar_lea.vmem %s3, %s282
        $region48: #{finalizer_forward.1} parent=39 // pred_fallthru
          _
      $region40: #{finalizer_forward.1} parent=5 // pred_fallthru
        _
      %p284 = scmp.le.s32.totalorder 1, %s19
      %p285 = scmp.lt.s32.totalorder %s19, 3
      %p286 = pnand %p284, %p285
      %p287 = pneg %p286
      // Predicated region
      $region49: #{finalizer_forward.1} parent=5 // pred_check
        _
      $region50: #{finalizer_forward.1} parent=5 // pred_check_branch
        %289 = sbr.rel (%p286) target = $region52
      $region51: #{finalizer_forward.1} parent=5 // pred_region
        %s290 = ssub.s32 %s19, 1
        // Predicated region
        $region53: #{finalizer_forward.1} parent=51 // pred_check
          %p291 = pneg %p61
        $region54: #{finalizer_forward.1} parent=51 // pred_check_branch
          %293 = sbr.rel (%p291) target = $region56
        $region55: #{finalizer_forward.1} parent=51 // pred_region
          %294 = dma.done [#allocation6], 16
        $region56: #{finalizer_forward.1} parent=51 // pred_fallthru
          _
        %295 = sfence
        %p296 = pneg %p40
        %p297 = pneg %p37
        %p298 = pneg %p61
        %p299 = pneg %p58
        %p300 = scmp.lt.s32.totalorder %s24, 1
        %s301 = scalar_select %p300, %s24, 1
        %s302 = smul.addr %s301, 2
        %s303 = smul.addr %s302, 4
        %s304 = scalar_lea.vmem %s2, %s303
        %p305 = pneg %p87
        %p306 = pneg %p84
        %p307 = scmp.lt.s32.totalorder %s24, 1
        %s308 = scalar_select %p307, %s24, 1
        %s309 = smul.addr %s308, 2
        %s310 = smul.addr %s309, 8
        %s311 = scalar_lea.vmem %s3, %s310
        %p312 = pneg %p113
        %p313 = pneg %p110
        %p314 = pneg %p134
        %p315 = pneg %p131
        %p316 = pneg %p155
        %p317 = pneg %p152
        %p318 = pneg %p176
        %p319 = pneg %p173
        %p320 = pneg %p197
        %p321 = pneg %p194
        %p322 = pneg %p223
        %p323 = pneg %p220
        %s324 = sand.u32 %s210, 1
        %s325 = scalar_lea.sflag [#allocation5], %s324
        %s326 = sand.u32 %s210, 1
        %s327 = smul.addr %s326, 40
        %s328 = scalar_lea.vmem [#allocation7], %s327
        %p329 = scmp.lt.s32.totalorder %s24, 1
        %s330 = scalar_select %p329, %s24, 1
        %s331 = smul.addr %s330, 2
        %s332 = smul.addr %s331, 4
        %s333 = scalar_lea.vmem %s2, %s332
        %p334 = scmp.lt.s32.totalorder %s24, 1
        %s335 = scalar_select %p334, %s24, 1
        %s336 = smul.addr %s335, 2
        %s337 = smul.addr %s336, 8
        %s338 = scalar_lea.vmem %s3, %s337
        %v340 = vld [vmem:[%s4] sm:$0xf]
        %v341 = vld [vmem:[%s4 + $0x4] sm:$0xf]
        %v342 = vld [vmem:[%s333] sm:$0xf]
        %v343 = vld [vmem:[%s333 + $0x4] sm:$0xf]
        %v346 = vunpack.c.l.b16 %v340
        %v347 = vunpack.c.l.b16 %v341
        %v348 = vpack.c.b16 %v347, %v346
        %v351 = vunpack.c.l.b16 %v342
        %v352 = vunpack.c.l.b16 %v343
        %v353 = vpack.c.b16 %v352, %v351
        %vm355 = vcmask 130048
        %v357 = vsel %vm355, %v348, 0
        %359 = vmatprep.subr.bf16.mxu0 0
        %360 = vmatpush1.bf16.msra.mxu0 %v353
        %361 = vmatprep.subr.bf16.mxu0 0
        %362 = vmatpush1.bf16.msra.mxu0 0
        %363 = vmatprep.subr.bf16.mxu0 0
        %364 = vmatpush1.bf16.msra.mxu0 0
        %365 = vmatprep.subr.bf16.mxu0 0
        %366 = vmatpush1.bf16.msra.mxu0 0
        %367 = vmatprep.subr.bf16.mxu0 0
        %368 = vmatpush1.bf16.msra.mxu0 0
        %369 = vmatprep.subr.bf16.mxu0 0
        %370 = vmatpush1.bf16.msra.mxu0 0
        %371 = vmatprep.subr.bf16.mxu0 0
        %372 = vmatpush1.bf16.msra.mxu0 0
        %373 = vmatprep.subr.bf16.mxu0 0
        %374 = vmatpush1.bf16.msra.mxu0 0
        %375 = vmatprep.subr.bf16.mxu0 0
        %376 = vmatpush1.bf16.msra.mxu0 0
        %377 = vmatprep.subr.bf16.mxu0 0
        %378 = vmatpush1.bf16.msra.mxu0 0
        %379 = vmatprep.subr.bf16.mxu0 0
        %380 = vmatpush1.bf16.msra.mxu0 0
        %381 = vmatprep.subr.bf16.mxu0 0
        %382 = vmatpush1.bf16.msra.mxu0 0
        %383 = vmatprep.subr.bf16.mxu0 0
        %384 = vmatpush1.bf16.msra.mxu0 0
        %385 = vmatprep.subr.bf16.mxu0 0
        %386 = vmatpush1.bf16.msra.mxu0 0
        %387 = vmatprep.subr.bf16.mxu0 0
        %388 = vmatpush1.bf16.msra.mxu0 0
        %389 = vmatprep.subr.bf16.mxu0 0
        %390 = vmatpush1.bf16.msra.mxu0 0
        %391 = vmatprep.mubr.bf16.mxu0 0
        %392 = vmatmul.mubr.bf16.gmra.mrb[0].mxu0 %v357
        %v393 = vpop.f32.mrb[0].mxu0
        %v394 = vadd.f32 0.0, %v393
        %v395 = vpop.f32.mrb[0].mxu0
        %v396 = vpop.f32.mrb[0].mxu0
        %v397 = vadd.f32 0.0, %v396
        %v398 = vpop.f32.mrb[0].mxu0
        %399 = vdwg.mxu0
        %v400 = vpack.c.bf16 %v397, %v394
        %v401 = vld [vmem:[%s5] sm:$0xf]
        %v402 = vld [vmem:[%s5 + $0x4] sm:$0xf]
        %v403 = vld [vmem:[%s5 + $0x8] sm:$0xf]
        %s404 = sld [smem:[#allocation3]]
        %v405 = vld [vmem:[%s338] sm:$0xff]
        %v406 = vld [vmem:[%s338 + $0x8] sm:$0xff]
        %v407 = vstv %s404
        %v408 = vmul.f32 %v407, %v405
        %v409 = vmul.f32 %v407, %v406
        %v413 = vunpack.c.l.b16 %v401
        %v414 = vunpack.c.l.b16 %v402
        %v415 = vunpack.c.l.b16 %v403
        %v416 = vpack.c.b16 %v414, %v413
        %v417 = vpack.c.b16 %v415, %v415
        %vm419 = vcmask 195584
        %v421 = vsel %vm419, %v400, 0
        %vm423 = vcmask 1043456
        %v425 = vsel %vm423, %v417, 0
        %427 = vmatprep.subr.bf16.mxu0 0
        %428 = vmatpush1.bf16.msra.mxu0 %v416
        %429 = vmatprep.subr.bf16.mxu0 0
        %430 = vmatpush1.bf16.msra.mxu0 %v425
        %431 = vmatprep.subr.bf16.mxu0 0
        %432 = vmatpush1.bf16.msra.mxu0 0
        %433 = vmatprep.subr.bf16.mxu0 0
        %434 = vmatpush1.bf16.msra.mxu0 0
        %435 = vmatprep.subr.bf16.mxu0 0
        %436 = vmatpush1.bf16.msra.mxu0 0
        %437 = vmatprep.subr.bf16.mxu0 0
        %438 = vmatpush1.bf16.msra.mxu0 0
        %439 = vmatprep.subr.bf16.mxu0 0
        %440 = vmatpush1.bf16.msra.mxu0 0
        %441 = vmatprep.subr.bf16.mxu0 0
        %442 = vmatpush1.bf16.msra.mxu0 0
        %443 = vmatprep.subr.bf16.mxu0 0
        %444 = vmatpush1.bf16.msra.mxu0 0
        %445 = vmatprep.subr.bf16.mxu0 0
        %446 = vmatpush1.bf16.msra.mxu0 0
        %447 = vmatprep.subr.bf16.mxu0 0
        %448 = vmatpush1.bf16.msra.mxu0 0
        %449 = vmatprep.subr.bf16.mxu0 0
        %450 = vmatpush1.bf16.msra.mxu0 0
        %451 = vmatprep.subr.bf16.mxu0 0
        %452 = vmatpush1.bf16.msra.mxu0 0
        %453 = vmatprep.subr.bf16.mxu0 0
        %454 = vmatpush1.bf16.msra.mxu0 0
        %455 = vmatprep.subr.bf16.mxu0 0
        %456 = vmatpush1.bf16.msra.mxu0 0
        %457 = vmatprep.subr.bf16.mxu0 0
        %458 = vmatpush1.bf16.msra.mxu0 0
        %459 = vmatprep.mubr.bf16.mxu0 0
        %460 = vmatmul.mubr.bf16.gmra.mrb[0].mxu0 %v421
        %v461 = vpop.f32.mrb[0].mxu0
        %v462 = vadd.f32 %v408, %v461
        %v463 = vpop.f32.mrb[0].mxu0
        %v464 = vpop.f32.mrb[0].mxu0
        %v465 = vadd.f32 %v409, %v464
        %v466 = vpop.f32.mrb[0].mxu0
        %467 = vdwg.mxu0
        %v468 = vld [vmem:[%s6] sm:$0xff]
        %v469 = vld [vmem:[%s6 + $0x8] sm:$0xff]
        %v470 = vld [vmem:[%s6 + $0x10] sm:$0xff]
        %v471 = vld [vmem:[%s6 + $0x18] sm:$0xff]
        %v472 = vld [vmem:[%s6 + $0x20] sm:$0xff]
        %v473 = vld [vmem:[%s6 + $0x28] sm:$0xff]
        %v474 = vld [vmem:[%s6 + $0x30] sm:$0xff]
        %v475 = vld [vmem:[%s6 + $0x38] sm:$0xff]
        %v476 = vld [vmem:[%s6 + $0x40] sm:$0xff]
        %v477 = vld [vmem:[%s6 + $0x48] sm:$0xff]
        %v478 = vld [vmem:[%s6 + $0x50] sm:$0xff]
        %v479 = vld [vmem:[%s6 + $0x58] sm:$0xff]
        %v480 = vld [vmem:[%s6 + $0x60] sm:$0xff]
        %v481 = vld [vmem:[%s6 + $0x68] sm:$0xff]
        %v482 = vld [vmem:[%s6 + $0x70] sm:$0xff]
        %v483 = vld [vmem:[%s6 + $0x78] sm:$0xff]
        %484 = vmatprep.subr.mxu0 0.0
        %485 = vmatpush1.msra.mxu0 %v468
        %486 = vmatprep.subr.mxu0 0.0
        %487 = vmatpush1.msra.mxu0 %v469
        %488 = vmatprep.subr.mxu0 0.0
        %489 = vmatpush1.msra.mxu0 %v470
        %490 = vmatprep.subr.mxu0 0.0
        %491 = vmatpush1.msra.mxu0 %v471
        %492 = vmatprep.subr.mxu0 0.0
        %493 = vmatpush1.msra.mxu0 %v472
        %494 = vmatprep.subr.mxu0 0.0
        %495 = vmatpush1.msra.mxu0 %v473
        %496 = vmatprep.subr.mxu0 0.0
        %497 = vmatpush1.msra.mxu0 %v474
        %498 = vmatprep.subr.mxu0 0.0
        %499 = vmatpush1.msra.mxu0 %v475
        %500 = vmatprep.subr.mxu0 0.0
        %501 = vmatpush1.msra.mxu0 %v476
        %502 = vmatprep.subr.mxu0 0.0
        %503 = vmatpush1.msra.mxu0 %v477
        %504 = vmatprep.subr.mxu0 0.0
        %505 = vmatpush1.msra.mxu0 %v478
        %506 = vmatprep.subr.mxu0 0.0
        %507 = vmatpush1.msra.mxu0 %v479
        %508 = vmatprep.subr.mxu0 0.0
        %509 = vmatpush1.msra.mxu0 %v480
        %510 = vmatprep.subr.mxu0 0.0
        %511 = vmatpush1.msra.mxu0 %v481
        %512 = vmatprep.subr.mxu0 0.0
        %513 = vmatpush1.msra.mxu0 %v482
        %514 = vmatprep.subr.mxu0 0.0
        %515 = vmatpush1.msra.mxu0 %v483
        %516 = vmatprep.subr.mxu0 0.0
        %517 = vmatpush1.msra.mxu0 0.0
        %518 = vmatprep.subr.mxu0 0.0
        %519 = vmatpush1.msra.mxu0 0.0
        %520 = vmatprep.subr.mxu0 0.0
        %521 = vmatpush1.msra.mxu0 0.0
        %522 = vmatprep.subr.mxu0 0.0
        %523 = vmatpush1.msra.mxu0 0.0
        %524 = vmatprep.subr.mxu0 0.0
        %525 = vmatpush1.msra.mxu0 0.0
        %526 = vmatprep.subr.mxu0 0.0
        %527 = vmatpush1.msra.mxu0 0.0
        %528 = vmatprep.subr.mxu0 0.0
        %529 = vmatpush1.msra.mxu0 0.0
        %530 = vmatprep.subr.mxu0 0.0
        %531 = vmatpush1.msra.mxu0 0.0
        %532 = vmatprep.subr.mxu0 0.0
        %533 = vmatpush1.msra.mxu0 0.0
        %534 = vmatprep.subr.mxu0 0.0
        %535 = vmatpush1.msra.mxu0 0.0
        %536 = vmatprep.subr.mxu0 0.0
        %537 = vmatpush1.msra.mxu0 0.0
        %538 = vmatprep.subr.mxu0 0.0
        %539 = vmatpush1.msra.mxu0 0.0
        %540 = vmatprep.subr.mxu0 0.0
        %541 = vmatpush1.msra.mxu0 0.0
        %542 = vmatprep.subr.mxu0 0.0
        %543 = vmatpush1.msra.mxu0 0.0
        %544 = vmatprep.subr.mxu0 0.0
        %545 = vmatpush1.msra.mxu0 0.0
        %546 = vmatprep.subr.mxu0 0.0
        %547 = vmatpush1.msra.mxu0 0.0
        %548 = vmatprep.mubr.f32.mxu0 0.0
        %549 = vmatmul.mubr.f32.gmra.mrb[0].mxu0 %v462
        %v550 = vpop.f32.mrb[0].mxu0
        %v551 = vadd.f32 0.0, %v550
        %v552 = vpop.f32.mrb[0].mxu0
        %553 = vmatprep.mubr.f32.mxu0 0.0
        %554 = vmatmul.mubr.f32.gmra.mrb[0].mxu0 %v465
        %v555 = vpop.f32.mrb[0].mxu0
        %v556 = vadd.f32 0.0, %v555
        %v557 = vpop.f32.mrb[0].mxu0
        %558 = vdwg.mxu0
        %v559 = vmax.f32 %v551, %v556
        %560 = vmax.xlane.f32.xlu0 %v559
        %v561 = vpop.xlane.xlu0 %560
        %v562 = vrot.slane %v561, 4
        %v563 = vmax.f32 %v561, %v562
        %v564 = vrot.slane %v563, 2
        %v565 = vmax.f32 %v563, %v564
        %v566 = vrot.slane %v565, 1
        %v567 = vmax.f32 %v565, %v566
        %s568 = vtos %v567
        %v569 = vld [vmem:[%s7] sm:$0xff]
        %v570 = vld [vmem:[%s7 + $0x8] sm:$0xff]
        %v571 = vstv %s568
        %v572 = vsub.f32 %v551, %v571
        %v573 = vsub.f32 %v556, %v571
        %v574 = vmul.f32 %v572, 1.442695
        %v575 = vpow.pop %v574
        %v576 = vmul.f32 %v573, 1.442695
        %v577 = vpow.pop %v576
        %v578 = vmul.f32 %v569, %v575
        %v579 = vmul.f32 %v570, %v577
        %v580 = vadd.f32 %v578, %v579
        %581 = vadd.xlane.f32.xlu0 %v580
        %v582 = vpop.xlane.xlu0 %581
        %v583 = vrot.slane %v582, 4
        %v584 = vadd.f32 %v582, %v583
        %v585 = vrot.slane %v584, 2
        %v586 = vadd.f32 %v584, %v585
        %v587 = vrot.slane %v586, 1
        %v588 = vadd.f32 %v586, %v587
        %s589 = vtos %v588
        %v590 = vstv %s589
        %v591 = vlog2.pop %v590
        %v592 = vmul.f32 %v591, 0.6931472
        %s593 = vtos %v592
        %s594 = sadd.f32 %s568, %s593
        %v595 = vstv %s594
        %v596 = vsub.f32 %v551, %v595
        %v597 = vsub.f32 %v556, %v595
        %598 = vst [vmem:[#allocation2] sm:$0xff] %v596
        %599 = vst [vmem:[#allocation2 + $0x8] sm:$0xff] %v597
        %v600 = vld [vmem:[#allocation2] sm:$0x1]
        %v601 = vlaneseq
        %v602 = vshrl.u32 %v601, 7
        %v603 = vsub.s32 0, %v602
        %v604 = vrot.slane %v600, %v603
        %605 = vst [vmem:[%s328] sm:$0xf] %v604
        %v606 = vld [vmem:[#allocation2 + $0x1] sm:$0x1]
        %v607 = vlaneseq
        %v608 = vshrl.u32 %v607, 7
        %v609 = vsub.s32 0, %v608
        %v610 = vrot.slane %v606, %v609
        %611 = vst [vmem:[%s328 + $0x4] sm:$0xf] %v610
        %v612 = vld [vmem:[#allocation2 + $0x2] sm:$0x1]
        %v613 = vlaneseq
        %v614 = vshrl.u32 %v613, 7
        %v615 = vsub.s32 0, %v614
        %v616 = vrot.slane %v612, %v615
        %617 = vst [vmem:[%s328 + $0x8] sm:$0xf] %v616
        %v618 = vld [vmem:[#allocation2 + $0x3] sm:$0x1]
        %v619 = vlaneseq
        %v620 = vshrl.u32 %v619, 7
        %v621 = vsub.s32 0, %v620
        %v622 = vrot.slane %v618, %v621
        %623 = vst [vmem:[%s328 + $0xc] sm:$0xf] %v622
        %v624 = vld [vmem:[#allocation2 + $0x4] sm:$0x1]
        %v625 = vlaneseq
        %v626 = vshrl.u32 %v625, 7
        %v627 = vsub.s32 0, %v626
        %v628 = vrot.slane %v624, %v627
        %629 = vst [vmem:[%s328 + $0x10] sm:$0xf] %v628
        %v630 = vld [vmem:[#allocation2 + $0x5] sm:$0x1]
        %v631 = vlaneseq
        %v632 = vshrl.u32 %v631, 7
        %v633 = vsub.s32 0, %v632
        %v634 = vrot.slane %v630, %v633
        %635 = vst [vmem:[%s328 + $0x14] sm:$0xf] %v634
        %v636 = vld [vmem:[#allocation2 + $0x6] sm:$0x1]
        %v637 = vlaneseq
        %v638 = vshrl.u32 %v637, 7
        %v639 = vsub.s32 0, %v638
        %v640 = vrot.slane %v636, %v639
        %641 = vst [vmem:[%s328 + $0x18] sm:$0xf] %v640
        %v642 = vld [vmem:[#allocation2 + $0x7] sm:$0x1]
        %v643 = vlaneseq
        %v644 = vshrl.u32 %v643, 7
        %v645 = vsub.s32 0, %v644
        %v646 = vrot.slane %v642, %v645
        %647 = vst [vmem:[%s328 + $0x1c] sm:$0xf] %v646
        %v648 = vld [vmem:[#allocation2 + $0x8] sm:$0x1]
        %v649 = vlaneseq
        %v650 = vshrl.u32 %v649, 7
        %v651 = vsub.s32 0, %v650
        %v652 = vrot.slane %v648, %v651
        %653 = vst [vmem:[%s328 + $0x20] sm:$0xf] %v652
        %v654 = vld [vmem:[#allocation2 + $0x9] sm:$0x1]
        %v655 = vlaneseq
        %v656 = vshrl.u32 %v655, 7
        %v657 = vsub.s32 0, %v656
        %v658 = vrot.slane %v654, %v657
        %659 = vst [vmem:[%s328 + $0x24] sm:$0xf] %v658
        %s660 = sand.u32 %s210, 1
        %s661 = scalar_lea.sflag [#allocation5], %s660
        %s662 = sand.u32 %s210, 1
        %s663 = smul.addr %s662, 40
        %s664 = scalar_lea.vmem [#allocation7], %s663
        // Predicated region
        $region57: #{finalizer_forward.1} parent=51 // pred_check
          %p665 = pneg %p220
        $region58: #{finalizer_forward.1} parent=51 // pred_check_branch
          %667 = sbr.rel (%p665) target = $region60
        $region59: #{finalizer_forward.1} parent=51 // pred_region
          %s669 = ssub.s32 640, 640
          %670 = vsyncadd %s661, %s669
          %s671 = smul.addr %s24, 5
          %s672 = smul.addr %s671, 128
          %s673 = scalar_lea.hbm %s8, %s672
          %s674 = sshll.u32 %s664, 4
          %s675 = int_to_ptr.vmem [resolvable:$true] %s674
          %680 = dma.vmem_to_hbm [thread:$0]  %s675, 640, %s673, %s661, 128, 128, 8
        $region60: #{finalizer_forward.1} parent=51 // pred_fallthru
          _
      $region52: #{finalizer_forward.1} parent=5 // pred_fallthru
        _
      %p681 = scmp.le.s32.totalorder 2, %s19
      // Predicated region
      $region61: #{finalizer_forward.1} parent=5 // pred_check
        %p682 = pneg %p681
      $region62: #{finalizer_forward.1} parent=5 // pred_check_branch
        %684 = sbr.rel (%p682) target = $region64
      $region63: #{finalizer_forward.1} parent=5 // pred_region
        %s685 = ssub.s32 %s19, 2
        // Predicated region
        $region65: #{finalizer_forward.1} parent=63 // pred_check
          %p686 = pneg %p226
        $region66: #{finalizer_forward.1} parent=63 // pred_check_branch
          %688 = sbr.rel (%p686) target = $region68
        $region67: #{finalizer_forward.1} parent=63 // pred_region
          %s689 = sand.u32 %s211, 1
          %s690 = scalar_lea.sflag [#allocation5], %s689
          %s691 = sand.u32 %s211, 1
          %s692 = smul.addr %s691, 40
          %s693 = scalar_lea.vmem [#allocation7], %s692
          %694 = dma.done %s690, 640
        $region68: #{finalizer_forward.1} parent=63 // pred_fallthru
          _
      $region64: #{finalizer_forward.1} parent=5 // pred_fallthru
        _
    $region6: #{finalizer_forward.1} parent=1 // loop_footer
      %s23 = sadd.s32 1, %s19
    $region7: #{finalizer_forward.1} parent=1 // loop_footer_branch
      %18 = sbr.rel target = $region3
    $region8: #{finalizer_forward.1} parent=1 // loop_exit
      _
    %695 = vsyncpa [#allocation5], 1
    %s696 = scalar_lea.sflag [#allocation5], 1
    %697 = vsyncpa %s696, 1
    %698 = vsyncpa [#allocation6], 1
    %s699 = scalar_lea.sflag [#allocation6], 1
    %700 = vsyncpa %s699, 1

</llo_original>
